<compile_context>
chip_gen: v7x
topology: tpu7x:2x2x1
jax: 0.10.0
libtpu: 0.0.40
codegen_flags: <defaults>
</compile_context>

<pallas_src>
import functools

import jax
import jax.numpy as jnp
from jax import lax
from jax.experimental import pallas as pl
from jax.experimental.pallas import tpu as pltpu


_VMEM_LIMIT_BYTES = 32 * 1024 * 1024  # do NOT raise toward 64 MiB (v7x headroom)


def _sublane_align(dtype):
    # native sublane packing of the *output* dtype (f32:8, bf16:16, int8/fp8:32)
    return {4: 8, 2: 16, 1: 32}.get(jnp.dtype(dtype).itemsize, 8)


def _pick_tile(n, target, align):
    """Largest multiple of `align` that divides n and is <= target."""
    t = (min(target, n) // align) * align
    while t >= align:
        if n % t == 0:
            return t
        t -= align
    return n  # unreachable when n is a multiple of 128 and align divides 128


def _choose_tiles(n_pad, d, out_dtype, vpu_path):
    align = max(_sublane_align(out_dtype), 8)
    # Keep 2 inputs x 2 pipeline buffers of (tile, D) f32 slabs a few MiB at most.
    if d <= 1024:
        row_target = 512
    elif d <= 2048:
        row_target = 256
    else:
        row_target = 128
    tn_target = min(row_target, 256 if vpu_path else 512)
    tn = _pick_tile(n_pad, tn_target, 128)
    tm = _pick_tile(n_pad, row_target, align)
    # Megacore (v7x has 2 TensorCores): give the parallel row axis >= 2 blocks
    # once there is real work; skip it for tiny batches (n_pad == 128) so
    # single-core chips pay no extra ~0.35us grid step on small problems.
    if n_pad // tm < 2 and n_pad >= 256:
        tm = _pick_tile(n_pad, max(align, tm // 2), align)
    return tm, tn


def _l2_mxu_kernel(a_ref, b_ref, asq_ref, bsq_ref, o_ref, *, precision, negate):
    # a_ref: (tm, D) row block,  b_ref: (tn, D) "column" block (still row-major)
    # asq_ref: (tm, 1) row sq-norms,  bsq_ref: (1, tn) col sq-norms (lane-dense)
    a = a_ref[...]
    b = b_ref[...]
    dot = lax.dot_general(a, b, (((1,), (1,)), ((), ())),
                          preferred_element_type=jnp.float32,
                          precision=precision)                      # (tm, tn)
    sq = asq_ref[...] + bsq_ref[...] - 2.0 * dot
    dist = jnp.sqrt(jnp.maximum(sq, 0.0))
    # Exact zeros on the diagonal (matches the reference semantics; the VALU
    # slack of a write-bound kernel makes this free).
    tm, tn = dist.shape
    row_ids = lax.broadcasted_iota(jnp.int32, (tm, tn), 0) + pl.program_id(0) * tm
    col_ids = lax.broadcasted_iota(jnp.int32, (tm, tn), 1) + pl.program_id(1) * tn
    dist = jnp.where(row_ids == col_ids, 0.0, dist)
    if negate:
        dist = -dist
    o_ref[...] = dist.astype(o_ref.dtype)


def _vpu_kernel(a_ref, bt_ref, o_ref, *, distance_type, negate):
    # Small-D exact path: every op is a dense (tm, tn) VPU tile, columns come
    # lane-dense from the (D, tn) transposed slab.  D is small here, so the
    # static unroll is a handful of iterations.
    a = a_ref[...].astype(jnp.float32)        # (tm, D)
    bt = bt_ref[...].astype(jnp.float32)      # (D, tn)
    tm = a.shape[0]
    tn = bt.shape[1]
    acc = jnp.zeros((tm, tn), jnp.float32)
    for k in range(a.shape[1]):
        diff = a[:, k:k + 1] - bt[k:k + 1, :]                       # (tm, tn)
        acc = acc + (jnp.abs(diff) if distance_type == "l1" else diff * diff)
    if distance_type == "l2":
        acc = jnp.sqrt(acc)
    if negate:
        acc = -acc
    o_ref[...] = acc.astype(o_ref.dtype)


@functools.partial(jax.jit, static_argnames=("distance_type", "negate"))
def pairwise_distance(x, distance_type="l1", *, negate=False):
    """out[i, j] = (-)||x[i] - x[j]||_{1 or 2}, shape (N, N)."""
    if distance_type not in ("l1", "l2"):
        raise ValueError(distance_type)
    n, d = x.shape
    out_dtype = x.dtype

    xc = x
    if xc.dtype not in (jnp.float32, jnp.bfloat16):
        xc = xc.astype(jnp.float32)

    # Pad N to a multiple of 128: lane-dense stores, guaranteed tile divisors.
    n_pad = max(128, ((n + 127) // 128) * 128)
    if n_pad != n:
        xc = jnp.pad(xc, ((0, n_pad - n), (0, 0)))

    use_mxu = (distance_type == "l2") and (d >= 8)
    tm, tn = _choose_tiles(n_pad, d, out_dtype, vpu_path=not use_mxu)
    grid = (n_pad // tm, n_pad // tn)

    out_shape = jax.ShapeDtypeStruct((n_pad, n_pad), out_dtype)
    out_spec = pl.BlockSpec((tm, tn), lambda i, j: (i, j))
    compiler_params = pltpu.CompilerParams(
        dimension_semantics=("parallel", "parallel"),
        vmem_limit_bytes=_VMEM_LIMIT_BYTES,
    )

    if use_mxu:
        # Row squared norms computed once (O(N*D)), reused by every tile.
        sq = jnp.sum(xc.astype(jnp.float32) ** 2, axis=1)
        sq_row = sq[:, None]          # (n_pad, 1)
        sq_col = sq[None, :]          # (1, n_pad), lane-dense
        precision = (lax.Precision.DEFAULT if xc.dtype == jnp.bfloat16
                     else lax.Precision.HIGHEST)
        # TODO(synk): on v5e with very large D the HIGHEST (bf16x6) matmul can become
        # the binding unit; feeding bf16 inputs there trades accuracy for speed.
        kernel = functools.partial(_l2_mxu_kernel, precision=precision, negate=negate)
        out = pl.pallas_call(
            kernel,
            out_shape=out_shape,
            grid_spec=pltpu.PrefetchScalarGridSpec(
                num_scalar_prefetch=0,
                grid=grid,
                in_specs=[
                    pl.BlockSpec((tm, d), lambda i, j: (i, 0)),   # row block
                    pl.BlockSpec((tn, d), lambda i, j: (j, 0)),   # col block (as rows)
                    pl.BlockSpec((tm, 1), lambda i, j: (i, 0)),   # ||row||^2
                    pl.BlockSpec((1, tn), lambda i, j: (0, j)),   # ||col||^2
                ],
                out_specs=out_spec,
            ),
            compiler_params=compiler_params,
        )(xc, xc, sq_row, sq_col)
    else:
        # Tiny (D, N) transposed copy for lane-dense columns; negligible vs N^2.
        xt = jnp.transpose(xc)
        kernel = functools.partial(_vpu_kernel, distance_type=distance_type,
                                   negate=negate)
        out = pl.pallas_call(
            kernel,
            out_shape=out_shape,
            grid_spec=pltpu.PrefetchScalarGridSpec(
                num_scalar_prefetch=0,
                grid=grid,
                in_specs=[
                    pl.BlockSpec((tm, d), lambda i, j: (i, 0)),
                    pl.BlockSpec((d, tn), lambda i, j: (0, j)),
                ],
                out_specs=out_spec,
            ),
            compiler_params=compiler_params,
        )(xc, xt)

    if n_pad != n:
        out = out[:n, :n]
    return out


def label_difference(labels, distance_type="l1"):
    """Pallas equivalent of LabelDifference.forward."""
    return pairwise_distance(labels, distance_type)


def feature_similarity(features, similarity_type="l2"):
    """Pallas equivalent of FeatureSimilarity.forward (negated L2 distance)."""
    if similarity_type != "l2":
        raise ValueError(similarity_type)
    # Negation fused into the kernel so the pass stays purely output-write bound.
    return pairwise_distance(features, "l2", negate=True)


# TODO(synk): the full RnCLoss_v2.forward (pose_error's 6D-rotation geodesic /
# translation errors via pytorch3d and the per-k masked ranking log-sum-exp loop)
# is host/XLA orchestration on top of these pairwise kernels and is not ported here.


def _reference_distance(x, distance_type="l1"):
    diff = x[:, None, :] - x[None, :, :]
    if distance_type == "l1":
        return jnp.abs(diff).sum(axis=-1)
    return jnp.sqrt(jnp.sum(diff * diff, axis=-1))


if __name__ == "__main__":
    key = jax.random.PRNGKey(0)
    k1, k2, k3, k4 = jax.random.split(key, 4)

    # LabelDifference (bs=128 in the module), small label dim -> exact VPU path.
    labels = jax.random.normal(k1, (128, 4), dtype=jnp.float32)
    out_l1 = jax.block_until_ready(label_difference(labels, "l1"))
    ref_l1 = _reference_distance(labels, "l1")
    assert out_l1.shape == (128, 128)
    assert jnp.allclose(out_l1, ref_l1, atol=1e-5, rtol=1e-5)

    out_l2 = jax.block_until_ready(label_difference(labels, "l2"))
    ref_l2 = _reference_distance(labels, "l2")
    assert jnp.allclose(out_l2, ref_l2, atol=1e-5, rtol=1e-5)

    # FeatureSimilarity (negated L2), hidden=32 -> MXU (||a||^2+||b||^2-2ab^T) path.
    feats = jax.random.normal(k2, (128, 32), dtype=jnp.float32)
    out_fs = jax.block_until_ready(feature_similarity(feats, "l2"))
    ref_fs = -_reference_distance(feats, "l2")
    assert jnp.allclose(out_fs, ref_fs, atol=2e-2, rtol=1e-3)

    # Larger feature dim, still MXU path.
    feats_big = jax.random.normal(k3, (128, 128), dtype=jnp.float32)
    out_big = jax.block_until_ready(pairwise_distance(feats_big, "l2"))
    ref_big = _reference_distance(feats_big, "l2")
    assert jnp.allclose(out_big, ref_big, atol=2e-2, rtol=1e-3)

    # Non-128-multiple batch exercises the pad-to-128 + slice path.
    feats_odd = jax.random.normal(k4, (100, 32), dtype=jnp.float32)
    out_odd = jax.block_until_ready(feature_similarity(feats_odd, "l2"))
    ref_odd = -_reference_distance(feats_odd, "l2")
    assert out_odd.shape == (100, 100)
    assert jnp.allclose(out_odd, ref_odd, atol=2e-2, rtol=1e-3)

    print("KERNEL_OK")
</pallas_src>

<mosaic_0001>
module attributes {stable_mosaic.version = 11 : i64} {
  func.func @_vpu_kernel(%arg0: i32, %arg1: i32, %arg2: memref<128x4xf32, #tpu.memory_space<vmem>>, %arg3: memref<4x128xf32, #tpu.memory_space<vmem>>, %arg4: memref<128x128xf32, #tpu.memory_space<vmem>>) attributes {dimension_semantics = [#tpu.dimension_semantics<parallel>, #tpu.dimension_semantics<parallel>], iteration_bounds = array<i64: 1, 1>, scalar_prefetch = 0 : i64, scratch_operands = 0 : i64, tpu.core_type = #tpu.core_type<tc>, window_params = [{transform_indices = @transform_0, window_bounds = array<i64: 128, 4>}, {transform_indices = @transform_1, window_bounds = array<i64: 4, 128>}, {transform_indices = @transform_2, window_bounds = array<i64: 128, 128>}]} {
    %c0 = arith.constant 0 : index
    %c0_0 = arith.constant 0 : index
    %0 = vector.load %arg2[%c0, %c0_0] : memref<128x4xf32, #tpu.memory_space<vmem>>, vector<128x4xf32>
    %c0_1 = arith.constant 0 : index
    %c0_2 = arith.constant 0 : index
    %1 = vector.load %arg3[%c0_1, %c0_2] : memref<4x128xf32, #tpu.memory_space<vmem>>, vector<4x128xf32>
    %cst = arith.constant 0.000000e+00 : f32
    %2 = vector.broadcast %cst : f32 to vector<128x128xf32>
    %3 = vector.extract_strided_slice %0 {offsets = [0, 0], sizes = [128, 1], strides = [1, 1]} : vector<128x4xf32> to vector<128x1xf32>
    %4 = vector.extract_strided_slice %1 {offsets = [0, 0], sizes = [1, 128], strides = [1, 1]} : vector<4x128xf32> to vector<1x128xf32>
    %5 = vector.broadcast %3 : vector<128x1xf32> to vector<128x128xf32>
    %6 = vector.broadcast %4 : vector<1x128xf32> to vector<128x128xf32>
    %7 = arith.subf %5, %6 : vector<128x128xf32>
    %8 = math.absf %7 : vector<128x128xf32>
    %9 = arith.addf %2, %8 : vector<128x128xf32>
    %10 = vector.extract_strided_slice %0 {offsets = [0, 1], sizes = [128, 1], strides = [1, 1]} : vector<128x4xf32> to vector<128x1xf32>
    %11 = vector.extract_strided_slice %1 {offsets = [1, 0], sizes = [1, 128], strides = [1, 1]} : vector<4x128xf32> to vector<1x128xf32>
    %12 = vector.broadcast %10 : vector<128x1xf32> to vector<128x128xf32>
    %13 = vector.broadcast %11 : vector<1x128xf32> to vector<128x128xf32>
    %14 = arith.subf %12, %13 : vector<128x128xf32>
    %15 = math.absf %14 : vector<128x128xf32>
    %16 = arith.addf %9, %15 : vector<128x128xf32>
    %17 = vector.extract_strided_slice %0 {offsets = [0, 2], sizes = [128, 1], strides = [1, 1]} : vector<128x4xf32> to vector<128x1xf32>
    %18 = vector.extract_strided_slice %1 {offsets = [2, 0], sizes = [1, 128], strides = [1, 1]} : vector<4x128xf32> to vector<1x128xf32>
    %19 = vector.broadcast %17 : vector<128x1xf32> to vector<128x128xf32>
    %20 = vector.broadcast %18 : vector<1x128xf32> to vector<128x128xf32>
    %21 = arith.subf %19, %20 : vector<128x128xf32>
    %22 = math.absf %21 : vector<128x128xf32>
    %23 = arith.addf %16, %22 : vector<128x128xf32>
    %24 = vector.extract_strided_slice %0 {offsets = [0, 3], sizes = [128, 1], strides = [1, 1]} : vector<128x4xf32> to vector<128x1xf32>
    %25 = vector.extract_strided_slice %1 {offsets = [3, 0], sizes = [1, 128], strides = [1, 1]} : vector<4x128xf32> to vector<1x128xf32>
    %26 = vector.broadcast %24 : vector<128x1xf32> to vector<128x128xf32>
    %27 = vector.broadcast %25 : vector<1x128xf32> to vector<128x128xf32>
    %28 = arith.subf %26, %27 : vector<128x128xf32>
    %29 = math.absf %28 : vector<128x128xf32>
    %30 = arith.addf %23, %29 : vector<128x128xf32>
    %c0_3 = arith.constant 0 : index
    %c0_4 = arith.constant 0 : index
    %31 = vector.load %arg4[%c0_3, %c0_4] : memref<128x128xf32, #tpu.memory_space<vmem>>, vector<128x128xf32>
    tpu.vector_store %arg4[%c0_3, %c0_4], %30 {strides = array<i32>} : memref<128x128xf32, #tpu.memory_space<vmem>>, vector<128x128xf32>,
    return
  }
  func.func @transform_0(%arg0: i32, %arg1: i32) -> (i32, i32) {
    %c0_i32 = arith.constant 0 : i32
    %c0_i32_0 = arith.constant 0 : i32
    return %arg0, %c0_i32 : i32, i32
  }
  func.func @transform_1(%arg0: i32, %arg1: i32) -> (i32, i32) {
    %c0_i32 = arith.constant 0 : i32
    %c0_i32_0 = arith.constant 0 : i32
    return %c0_i32, %arg1 : i32, i32
  }
  func.func @transform_2(%arg0: i32, %arg1: i32) -> (i32, i32) {
    %c0_i32 = arith.constant 0 : i32
    return %arg0, %arg1 : i32, i32
  }
}

</mosaic_0001>

<llo_original>
// kernel: pairwise_distance.1
$region0: #{pairwise_distance.1}
  #allocation0 [shape = 'u32[]', space=smem, size = 0x4, offset = 0x4, fixed_abs, tag = 'smem constant byte address 0x4 - core index']
  #allocation1 [shape = 'u32[144,128]{1,0:T(1,128)}', space=vmem, size = 0x12000, scoped, tag = 'internal scratch']
  %s0 = inlined_call_operand.vmem [shape: f32[128,4], index: 0, kind: input, shape index: {}]
  %s1 = inlined_call_operand.vmem [shape: f32[4,128], index: 1, kind: input, shape index: {}]
  %s2 = inlined_call_operand.hbm [shape: f32[128,128], index: 2, kind: output, shape index: {}]
  %s3 = sld [smem:[#allocation0]]
  $region18: #{pairwise_distance.1} parent=0
    _
  %s5 = ssub.s32 1, %s3
  %s6 = scalar_select 0, %s5, %s3
  $region1: #{pairwise_distance.1} parent=0
    #allocation2 [shape = 'u8[65536]{0}', space=vmem, size = 0x10000, scoped, tag = 'output window, operand 0, single buffered']
    #allocation3 [shape = 's32[1]{0}', space=sflag, size = 0x4, scoped, tag = 'scoped memory for pairwise_distance.1']
    %7 = vsyncpa [#allocation3], 0
    // Predicated region
    $region2: #{pairwise_distance.1} parent=1 // pred_check
      _
    $region3: #{pairwise_distance.1} parent=1 // pred_check_branch
      %9 = sbr.rel (0) target = $region5
    $region4: #{pairwise_distance.1} parent=1 // pred_region
      _
    $region5: #{pairwise_distance.1} parent=1 // pred_fallthru
      _
    // Predicated region
    $region6: #{pairwise_distance.1} parent=1 // pred_check
      _
    $region7: #{pairwise_distance.1} parent=1 // pred_check_branch
      %11 = sbr.rel (0) target = $region9
    $region8: #{pairwise_distance.1} parent=1 // pred_region
      _
    $region9: #{pairwise_distance.1} parent=1 // pred_fallthru
      _
    %v12 = vld [vmem:[%s0] sm:$0xff]
    %v13 = vld [vmem:[%s0 + $0x8] sm:$0xff]
    %v14 = vld [vmem:[%s0 + $0x10] sm:$0xff]
    %v15 = vld [vmem:[%s0 + $0x18] sm:$0xff]
    %v16 = vld [vmem:[%s0 + $0x20] sm:$0xff]
    %v17 = vld [vmem:[%s0 + $0x28] sm:$0xff]
    %v18 = vld [vmem:[%s0 + $0x30] sm:$0xff]
    %v19 = vld [vmem:[%s0 + $0x38] sm:$0xff]
    %v20 = vld [vmem:[%s0 + $0x40] sm:$0xff]
    %v21 = vld [vmem:[%s0 + $0x48] sm:$0xff]
    %v22 = vld [vmem:[%s0 + $0x50] sm:$0xff]
    %v23 = vld [vmem:[%s0 + $0x58] sm:$0xff]
    %v24 = vld [vmem:[%s0 + $0x60] sm:$0xff]
    %v25 = vld [vmem:[%s0 + $0x68] sm:$0xff]
    %v26 = vld [vmem:[%s0 + $0x70] sm:$0xff]
    %v27 = vld [vmem:[%s0 + $0x78] sm:$0xff]
    %v28 = vld [vmem:[%s1] sm:$0xf]
    %30 = vset.pattern.permute.xlu0 0
    %31 = vperm.xlu0 %30, %v12
    %v32 = vpop.permute.xlu0 %31
    %35 = vset.pattern.permute.xlu0 0
    %36 = vperm.xlu0 %35, %v13
    %v37 = vpop.permute.xlu0 %36
    %40 = vset.pattern.permute.xlu0 0
    %41 = vperm.xlu0 %40, %v14
    %v42 = vpop.permute.xlu0 %41
    %45 = vset.pattern.permute.xlu0 0
    %46 = vperm.xlu0 %45, %v15
    %v47 = vpop.permute.xlu0 %46
    %50 = vset.pattern.permute.xlu0 0
    %51 = vperm.xlu0 %50, %v16
    %v52 = vpop.permute.xlu0 %51
    %55 = vset.pattern.permute.xlu0 0
    %56 = vperm.xlu0 %55, %v17
    %v57 = vpop.permute.xlu0 %56
    %60 = vset.pattern.permute.xlu0 0
    %61 = vperm.xlu0 %60, %v18
    %v62 = vpop.permute.xlu0 %61
    %65 = vset.pattern.permute.xlu0 0
    %66 = vperm.xlu0 %65, %v19
    %v67 = vpop.permute.xlu0 %66
    %70 = vset.pattern.permute.xlu0 0
    %71 = vperm.xlu0 %70, %v20
    %v72 = vpop.permute.xlu0 %71
    %75 = vset.pattern.permute.xlu0 0
    %76 = vperm.xlu0 %75, %v21
    %v77 = vpop.permute.xlu0 %76
    %80 = vset.pattern.permute.xlu0 0
    %81 = vperm.xlu0 %80, %v22
    %v82 = vpop.permute.xlu0 %81
    %85 = vset.pattern.permute.xlu0 0
    %86 = vperm.xlu0 %85, %v23
    %v87 = vpop.permute.xlu0 %86
    %90 = vset.pattern.permute.xlu0 0
    %91 = vperm.xlu0 %90, %v24
    %v92 = vpop.permute.xlu0 %91
    %95 = vset.pattern.permute.xlu0 0
    %96 = vperm.xlu0 %95, %v25
    %v97 = vpop.permute.xlu0 %96
    %100 = vset.pattern.permute.xlu0 0
    %101 = vperm.xlu0 %100, %v26
    %v102 = vpop.permute.xlu0 %101
    %105 = vset.pattern.permute.xlu0 0
    %106 = vperm.xlu0 %105, %v27
    %v107 = vpop.permute.xlu0 %106
    %v109 = vlaneseq
    %v110 = vshrl.u32 %v109, 7
    %v111 = vsub.s32 0, %v110
    %v112 = vrot.slane %v28, %v111
    %v113 = vsub.f32 %v32, %v112
    %v114 = vsub.f32 %v37, %v112
    %v115 = vsub.f32 %v42, %v112
    %v116 = vsub.f32 %v47, %v112
    %v117 = vsub.f32 %v52, %v112
    %v118 = vsub.f32 %v57, %v112
    %v119 = vsub.f32 %v62, %v112
    %v120 = vsub.f32 %v67, %v112
    %v121 = vsub.f32 %v72, %v112
    %v122 = vsub.f32 %v77, %v112
    %v123 = vsub.f32 %v82, %v112
    %v124 = vsub.f32 %v87, %v112
    %v125 = vsub.f32 %v92, %v112
    %v126 = vsub.f32 %v97, %v112
    %v127 = vsub.f32 %v102, %v112
    %v128 = vsub.f32 %v107, %v112
    %v129 = vand.u32 2147483647, %v113
    %v130 = vand.u32 2147483647, %v114
    %v131 = vand.u32 2147483647, %v115
    %v132 = vand.u32 2147483647, %v116
    %v133 = vand.u32 2147483647, %v117
    %v134 = vand.u32 2147483647, %v118
    %v135 = vand.u32 2147483647, %v119
    %v136 = vand.u32 2147483647, %v120
    %v137 = vand.u32 2147483647, %v121
    %v138 = vand.u32 2147483647, %v122
    %v139 = vand.u32 2147483647, %v123
    %v140 = vand.u32 2147483647, %v124
    %v141 = vand.u32 2147483647, %v125
    %v142 = vand.u32 2147483647, %v126
    %v143 = vand.u32 2147483647, %v127
    %v144 = vand.u32 2147483647, %v128
    %v145 = vadd.f32 %v129, 0.0
    %v146 = vadd.f32 %v130, 0.0
    %v147 = vadd.f32 %v131, 0.0
    %v148 = vadd.f32 %v132, 0.0
    %v149 = vadd.f32 %v133, 0.0
    %v150 = vadd.f32 %v134, 0.0
    %v151 = vadd.f32 %v135, 0.0
    %v152 = vadd.f32 %v136, 0.0
    %v153 = vadd.f32 %v137, 0.0
    %v154 = vadd.f32 %v138, 0.0
    %v155 = vadd.f32 %v139, 0.0
    %v156 = vadd.f32 %v140, 0.0
    %v157 = vadd.f32 %v141, 0.0
    %v158 = vadd.f32 %v142, 0.0
    %v159 = vadd.f32 %v143, 0.0
    %v160 = vadd.f32 %v144, 0.0
    %161 = vset.pattern.permute.xlu0 1
    %162 = vperm.xlu0 %161, %v12
    %v163 = vpop.permute.xlu0 %162
    %165 = vset.pattern.permute.xlu0 1
    %166 = vperm.xlu0 %165, %v13
    %v167 = vpop.permute.xlu0 %166
    %169 = vset.pattern.permute.xlu0 1
    %170 = vperm.xlu0 %169, %v14
    %v171 = vpop.permute.xlu0 %170
    %173 = vset.pattern.permute.xlu0 1
    %174 = vperm.xlu0 %173, %v15
    %v175 = vpop.permute.xlu0 %174
    %177 = vset.pattern.permute.xlu0 1
    %178 = vperm.xlu0 %177, %v16
    %v179 = vpop.permute.xlu0 %178
    %181 = vset.pattern.permute.xlu0 1
    %182 = vperm.xlu0 %181, %v17
    %v183 = vpop.permute.xlu0 %182
    %185 = vset.pattern.permute.xlu0 1
    %186 = vperm.xlu0 %185, %v18
    %v187 = vpop.permute.xlu0 %186
    %189 = vset.pattern.permute.xlu0 1
    %190 = vperm.xlu0 %189, %v19
    %v191 = vpop.permute.xlu0 %190
    %193 = vset.pattern.permute.xlu0 1
    %194 = vperm.xlu0 %193, %v20
    %v195 = vpop.permute.xlu0 %194
    %197 = vset.pattern.permute.xlu0 1
    %198 = vperm.xlu0 %197, %v21
    %v199 = vpop.permute.xlu0 %198
    %201 = vset.pattern.permute.xlu0 1
    %202 = vperm.xlu0 %201, %v22
    %v203 = vpop.permute.xlu0 %202
    %205 = vset.pattern.permute.xlu0 1
    %206 = vperm.xlu0 %205, %v23
    %v207 = vpop.permute.xlu0 %206
    %209 = vset.pattern.permute.xlu0 1
    %210 = vperm.xlu0 %209, %v24
    %v211 = vpop.permute.xlu0 %210
    %213 = vset.pattern.permute.xlu0 1
    %214 = vperm.xlu0 %213, %v25
    %v215 = vpop.permute.xlu0 %214
    %217 = vset.pattern.permute.xlu0 1
    %218 = vperm.xlu0 %217, %v26
    %v219 = vpop.permute.xlu0 %218
    %221 = vset.pattern.permute.xlu0 1
    %222 = vperm.xlu0 %221, %v27
    %v223 = vpop.permute.xlu0 %222
    %v225 = vlaneseq
    %v226 = vshrl.u32 %v225, 7
    %v227 = vsub.s32 1, %v226
    %v228 = vrot.slane %v28, %v227
    %v229 = vsub.f32 %v163, %v228
    %v230 = vsub.f32 %v167, %v228
    %v231 = vsub.f32 %v171, %v228
    %v232 = vsub.f32 %v175, %v228
    %v233 = vsub.f32 %v179, %v228
    %v234 = vsub.f32 %v183, %v228
    %v235 = vsub.f32 %v187, %v228
    %v236 = vsub.f32 %v191, %v228
    %v237 = vsub.f32 %v195, %v228
    %v238 = vsub.f32 %v199, %v228
    %v239 = vsub.f32 %v203, %v228
    %v240 = vsub.f32 %v207, %v228
    %v241 = vsub.f32 %v211, %v228
    %v242 = vsub.f32 %v215, %v228
    %v243 = vsub.f32 %v219, %v228
    %v244 = vsub.f32 %v223, %v228
    %v245 = vand.u32 2147483647, %v229
    %v246 = vand.u32 2147483647, %v230
    %v247 = vand.u32 2147483647, %v231
    %v248 = vand.u32 2147483647, %v232
    %v249 = vand.u32 2147483647, %v233
    %v250 = vand.u32 2147483647, %v234
    %v251 = vand.u32 2147483647, %v235
    %v252 = vand.u32 2147483647, %v236
    %v253 = vand.u32 2147483647, %v237
    %v254 = vand.u32 2147483647, %v238
    %v255 = vand.u32 2147483647, %v239
    %v256 = vand.u32 2147483647, %v240
    %v257 = vand.u32 2147483647, %v241
    %v258 = vand.u32 2147483647, %v242
    %v259 = vand.u32 2147483647, %v243
    %v260 = vand.u32 2147483647, %v244
    %v261 = vadd.f32 %v145, %v245
    %v262 = vadd.f32 %v146, %v246
    %v263 = vadd.f32 %v147, %v247
    %v264 = vadd.f32 %v148, %v248
    %v265 = vadd.f32 %v149, %v249
    %v266 = vadd.f32 %v150, %v250
    %v267 = vadd.f32 %v151, %v251
    %v268 = vadd.f32 %v152, %v252
    %v269 = vadd.f32 %v153, %v253
    %v270 = vadd.f32 %v154, %v254
    %v271 = vadd.f32 %v155, %v255
    %v272 = vadd.f32 %v156, %v256
    %v273 = vadd.f32 %v157, %v257
    %v274 = vadd.f32 %v158, %v258
    %v275 = vadd.f32 %v159, %v259
    %v276 = vadd.f32 %v160, %v260
    %277 = vset.pattern.permute.xlu0 2
    %278 = vperm.xlu0 %277, %v12
    %v279 = vpop.permute.xlu0 %278
    %281 = vset.pattern.permute.xlu0 2
    %282 = vperm.xlu0 %281, %v13
    %v283 = vpop.permute.xlu0 %282
    %285 = vset.pattern.permute.xlu0 2
    %286 = vperm.xlu0 %285, %v14
    %v287 = vpop.permute.xlu0 %286
    %289 = vset.pattern.permute.xlu0 2
    %290 = vperm.xlu0 %289, %v15
    %v291 = vpop.permute.xlu0 %290
    %293 = vset.pattern.permute.xlu0 2
    %294 = vperm.xlu0 %293, %v16
    %v295 = vpop.permute.xlu0 %294
    %297 = vset.pattern.permute.xlu0 2
    %298 = vperm.xlu0 %297, %v17
    %v299 = vpop.permute.xlu0 %298
    %301 = vset.pattern.permute.xlu0 2
    %302 = vperm.xlu0 %301, %v18
    %v303 = vpop.permute.xlu0 %302
    %305 = vset.pattern.permute.xlu0 2
    %306 = vperm.xlu0 %305, %v19
    %v307 = vpop.permute.xlu0 %306
    %309 = vset.pattern.permute.xlu0 2
    %310 = vperm.xlu0 %309, %v20
    %v311 = vpop.permute.xlu0 %310
    %313 = vset.pattern.permute.xlu0 2
    %314 = vperm.xlu0 %313, %v21
    %v315 = vpop.permute.xlu0 %314
    %317 = vset.pattern.permute.xlu0 2
    %318 = vperm.xlu0 %317, %v22
    %v319 = vpop.permute.xlu0 %318
    %321 = vset.pattern.permute.xlu0 2
    %322 = vperm.xlu0 %321, %v23
    %v323 = vpop.permute.xlu0 %322
    %325 = vset.pattern.permute.xlu0 2
    %326 = vperm.xlu0 %325, %v24
    %v327 = vpop.permute.xlu0 %326
    %329 = vset.pattern.permute.xlu0 2
    %330 = vperm.xlu0 %329, %v25
    %v331 = vpop.permute.xlu0 %330
    %333 = vset.pattern.permute.xlu0 2
    %334 = vperm.xlu0 %333, %v26
    %v335 = vpop.permute.xlu0 %334
    %337 = vset.pattern.permute.xlu0 2
    %338 = vperm.xlu0 %337, %v27
    %v339 = vpop.permute.xlu0 %338
    %v341 = vlaneseq
    %v342 = vshrl.u32 %v341, 7
    %v343 = vsub.s32 2, %v342
    %v344 = vrot.slane %v28, %v343
    %v345 = vsub.f32 %v279, %v344
    %v346 = vsub.f32 %v283, %v344
    %v347 = vsub.f32 %v287, %v344
    %v348 = vsub.f32 %v291, %v344
    %v349 = vsub.f32 %v295, %v344
    %v350 = vsub.f32 %v299, %v344
    %v351 = vsub.f32 %v303, %v344
    %v352 = vsub.f32 %v307, %v344
    %v353 = vsub.f32 %v311, %v344
    %v354 = vsub.f32 %v315, %v344
    %v355 = vsub.f32 %v319, %v344
    %v356 = vsub.f32 %v323, %v344
    %v357 = vsub.f32 %v327, %v344
    %v358 = vsub.f32 %v331, %v344
    %v359 = vsub.f32 %v335, %v344
    %v360 = vsub.f32 %v339, %v344
    %v361 = vand.u32 2147483647, %v345
    %v362 = vand.u32 2147483647, %v346
    %v363 = vand.u32 2147483647, %v347
    %v364 = vand.u32 2147483647, %v348
    %v365 = vand.u32 2147483647, %v349
    %v366 = vand.u32 2147483647, %v350
    %v367 = vand.u32 2147483647, %v351
    %v368 = vand.u32 2147483647, %v352
    %v369 = vand.u32 2147483647, %v353
    %v370 = vand.u32 2147483647, %v354
    %v371 = vand.u32 2147483647, %v355
    %v372 = vand.u32 2147483647, %v356
    %v373 = vand.u32 2147483647, %v357
    %v374 = vand.u32 2147483647, %v358
    %v375 = vand.u32 2147483647, %v359
    %v376 = vand.u32 2147483647, %v360
    %v377 = vadd.f32 %v261, %v361
    %v378 = vadd.f32 %v262, %v362
    %v379 = vadd.f32 %v263, %v363
    %v380 = vadd.f32 %v264, %v364
    %v381 = vadd.f32 %v265, %v365
    %v382 = vadd.f32 %v266, %v366
    %v383 = vadd.f32 %v267, %v367
    %v384 = vadd.f32 %v268, %v368
    %v385 = vadd.f32 %v269, %v369
    %v386 = vadd.f32 %v270, %v370
    %v387 = vadd.f32 %v271, %v371
    %v388 = vadd.f32 %v272, %v372
    %v389 = vadd.f32 %v273, %v373
    %v390 = vadd.f32 %v274, %v374
    %v391 = vadd.f32 %v275, %v375
    %v392 = vadd.f32 %v276, %v376
    %393 = vset.pattern.permute.xlu0 3
    %394 = vperm.xlu0 %393, %v12
    %v395 = vpop.permute.xlu0 %394
    %397 = vset.pattern.permute.xlu0 3
    %398 = vperm.xlu0 %397, %v13
    %v399 = vpop.permute.xlu0 %398
    %401 = vset.pattern.permute.xlu0 3
    %402 = vperm.xlu0 %401, %v14
    %v403 = vpop.permute.xlu0 %402
    %405 = vset.pattern.permute.xlu0 3
    %406 = vperm.xlu0 %405, %v15
    %v407 = vpop.permute.xlu0 %406
    %409 = vset.pattern.permute.xlu0 3
    %410 = vperm.xlu0 %409, %v16
    %v411 = vpop.permute.xlu0 %410
    %413 = vset.pattern.permute.xlu0 3
    %414 = vperm.xlu0 %413, %v17
    %v415 = vpop.permute.xlu0 %414
    %417 = vset.pattern.permute.xlu0 3
    %418 = vperm.xlu0 %417, %v18
    %v419 = vpop.permute.xlu0 %418
    %421 = vset.pattern.permute.xlu0 3
    %422 = vperm.xlu0 %421, %v19
    %v423 = vpop.permute.xlu0 %422
    %425 = vset.pattern.permute.xlu0 3
    %426 = vperm.xlu0 %425, %v20
    %v427 = vpop.permute.xlu0 %426
    %429 = vset.pattern.permute.xlu0 3
    %430 = vperm.xlu0 %429, %v21
    %v431 = vpop.permute.xlu0 %430
    %433 = vset.pattern.permute.xlu0 3
    %434 = vperm.xlu0 %433, %v22
    %v435 = vpop.permute.xlu0 %434
    %437 = vset.pattern.permute.xlu0 3
    %438 = vperm.xlu0 %437, %v23
    %v439 = vpop.permute.xlu0 %438
    %441 = vset.pattern.permute.xlu0 3
    %442 = vperm.xlu0 %441, %v24
    %v443 = vpop.permute.xlu0 %442
    %445 = vset.pattern.permute.xlu0 3
    %446 = vperm.xlu0 %445, %v25
    %v447 = vpop.permute.xlu0 %446
    %449 = vset.pattern.permute.xlu0 3
    %450 = vperm.xlu0 %449, %v26
    %v451 = vpop.permute.xlu0 %450
    %453 = vset.pattern.permute.xlu0 3
    %454 = vperm.xlu0 %453, %v27
    %v455 = vpop.permute.xlu0 %454
    %v457 = vlaneseq
    %v458 = vshrl.u32 %v457, 7
    %v459 = vsub.s32 3, %v458
    %v460 = vrot.slane %v28, %v459
    %v461 = vsub.f32 %v395, %v460
    %v462 = vsub.f32 %v399, %v460
    %v463 = vsub.f32 %v403, %v460
    %v464 = vsub.f32 %v407, %v460
    %v465 = vsub.f32 %v411, %v460
    %v466 = vsub.f32 %v415, %v460
    %v467 = vsub.f32 %v419, %v460
    %v468 = vsub.f32 %v423, %v460
    %v469 = vsub.f32 %v427, %v460
    %v470 = vsub.f32 %v431, %v460
    %v471 = vsub.f32 %v435, %v460
    %v472 = vsub.f32 %v439, %v460
    %v473 = vsub.f32 %v443, %v460
    %v474 = vsub.f32 %v447, %v460
    %v475 = vsub.f32 %v451, %v460
    %v476 = vsub.f32 %v455, %v460
    %v477 = vand.u32 2147483647, %v461
    %v478 = vand.u32 2147483647, %v462
    %v479 = vand.u32 2147483647, %v463
    %v480 = vand.u32 2147483647, %v464
    %v481 = vand.u32 2147483647, %v465
    %v482 = vand.u32 2147483647, %v466
    %v483 = vand.u32 2147483647, %v467
    %v484 = vand.u32 2147483647, %v468
    %v485 = vand.u32 2147483647, %v469
    %v486 = vand.u32 2147483647, %v470
    %v487 = vand.u32 2147483647, %v471
    %v488 = vand.u32 2147483647, %v472
    %v489 = vand.u32 2147483647, %v473
    %v490 = vand.u32 2147483647, %v474
    %v491 = vand.u32 2147483647, %v475
    %v492 = vand.u32 2147483647, %v476
    %v493 = vadd.f32 %v377, %v477
    %v494 = vadd.f32 %v378, %v478
    %v495 = vadd.f32 %v379, %v479
    %v496 = vadd.f32 %v380, %v480
    %v497 = vadd.f32 %v381, %v481
    %v498 = vadd.f32 %v382, %v482
    %v499 = vadd.f32 %v383, %v483
    %v500 = vadd.f32 %v384, %v484
    %v501 = vadd.f32 %v385, %v485
    %v502 = vadd.f32 %v386, %v486
    %v503 = vadd.f32 %v387, %v487
    %v504 = vadd.f32 %v388, %v488
    %v505 = vadd.f32 %v389, %v489
    %v506 = vadd.f32 %v390, %v490
    %v507 = vadd.f32 %v391, %v491
    %v508 = vadd.f32 %v392, %v492
    %509 = vst [vmem:[#allocation2] sm:$0xff] %v493
    %510 = vst [vmem:[#allocation2 + $0x8] sm:$0xff] %v494
    %511 = vst [vmem:[#allocation2 + $0x10] sm:$0xff] %v495
    %512 = vst [vmem:[#allocation2 + $0x18] sm:$0xff] %v496
    %513 = vst [vmem:[#allocation2 + $0x20] sm:$0xff] %v497
    %514 = vst [vmem:[#allocation2 + $0x28] sm:$0xff] %v498
    %515 = vst [vmem:[#allocation2 + $0x30] sm:$0xff] %v499
    %516 = vst [vmem:[#allocation2 + $0x38] sm:$0xff] %v500
    %517 = vst [vmem:[#allocation2 + $0x40] sm:$0xff] %v501
    %518 = vst [vmem:[#allocation2 + $0x48] sm:$0xff] %v502
    %519 = vst [vmem:[#allocation2 + $0x50] sm:$0xff] %v503
    %520 = vst [vmem:[#allocation2 + $0x58] sm:$0xff] %v504
    %521 = vst [vmem:[#allocation2 + $0x60] sm:$0xff] %v505
    %522 = vst [vmem:[#allocation2 + $0x68] sm:$0xff] %v506
    %523 = vst [vmem:[#allocation2 + $0x70] sm:$0xff] %v507
    %524 = vst [vmem:[#allocation2 + $0x78] sm:$0xff] %v508
    // Predicated region
    $region10: #{pairwise_distance.1} parent=1 // pred_check
      _
    $region11: #{pairwise_distance.1} parent=1 // pred_check_branch
      %526 = sbr.rel (0) target = $region13
    $region12: #{pairwise_distance.1} parent=1 // pred_region
      %s528 = ssub.s32 2048, 2048
      %529 = vsyncadd [#allocation3], %s528
      %s530 = sshll.u32 [#allocation2], 4
      %s531 = int_to_ptr.vmem [resolvable:$true] %s530
      %536 = dma.vmem_to_hbm [thread:$0]  %s531, 2048, %s2, [#allocation3], 128, 128, 8
    $region13: #{pairwise_distance.1} parent=1 // pred_fallthru
      _
    // Predicated region
    $region14: #{pairwise_distance.1} parent=1 // pred_check
      _
    $region15: #{pairwise_distance.1} parent=1 // pred_check_branch
      %538 = sbr.rel (0) target = $region17
    $region16: #{pairwise_distance.1} parent=1 // pred_region
      %539 = dma.done [#allocation3], 2048
    $region17: #{pairwise_distance.1} parent=1 // pred_fallthru
      _
    %540 = vsyncpa [#allocation3], 1

</llo_original>
